<compile_context>
chip_gen: v6e
topology: v6e:2x2x1
jax: 0.10.0
libtpu: 0.0.40
codegen_flags: <defaults>
</compile_context>

<pallas_src>
import functools

import jax
import jax.numpy as jnp
from jax import lax
from jax.experimental import pallas as pl
from jax.experimental.pallas import tpu as pltpu


def _round_up(x, m):
    return (x + m - 1) // m * m


_INT32_MAX = 2 ** 31 - 1


# ----------------------------------------------------------------------------
# Kernel 1: image preprocessing  (new_img = new_img.float() / 255.0)
# ----------------------------------------------------------------------------
def _preprocess_kernel(img_ref, out_ref):
    # exact torch semantics: divide (not multiply by reciprocal)
    x = img_ref[...].astype(jnp.float32) / 255.0
    out_ref[...] = x.astype(out_ref.dtype)


def _pick_h_tile(h, target=1024):
    # Largest divisor of h that is a multiple of 8 and <= target, so no HBM
    # padding / slicing is ever needed.  Falls back to the whole plane.
    if h <= target:
        return h
    for t in range(target, 7, -1):
        if h % t == 0 and t % 8 == 0:
            return t
    return h


def preprocess_image(img_u8, *, half=False):
    """img_u8: (B, C, H, W) uint8 -> (B, C, H, W) float32 (bf16 if half) in [0, 1].

    Tiled over (B*C, H // h_tile); each block is (1, h_tile, W) so the last two
    block dims are either full-extent or 8-aligned divisors -> legal without any
    padding, and the kernel is a pure software-pipelined HBM pass.
    """
    B, C, H, W = img_u8.shape
    # torch `.half()` path -> TPU-native bf16 (halves the dominant HBM write)
    out_dtype = jnp.bfloat16 if half else jnp.float32
    h_tile = _pick_h_tile(H)
    flat = img_u8.reshape(B * C, H, W)            # metadata-only reshape

    out = pl.pallas_call(
        _preprocess_kernel,
        out_shape=jax.ShapeDtypeStruct((B * C, H, W), out_dtype),
        grid=(B * C, H // h_tile),
        in_specs=[pl.BlockSpec((1, h_tile, W), lambda i, h: (i, h, 0))],
        out_specs=pl.BlockSpec((1, h_tile, W), lambda i, h: (i, h, 0)),
        compiler_params=pltpu.CompilerParams(
            dimension_semantics=("parallel", "parallel")),
    )(flat)
    return out.reshape(B, C, H, W)


# ----------------------------------------------------------------------------
# Kernel 2: fused gallery-normalize + distance + running min / argmin
# ----------------------------------------------------------------------------
def _face_match_kernel(q_ref, g_ref, min_ref, idx_ref,
                       qsq_sc, qbf_sc, max_sc, idx_sc, *, n_valid):
    j = pl.program_id(0)
    n_tile = g_ref.shape[0]

    @pl.when(j == 0)
    def _():
        q = q_ref[...]
        # hoisted query-side work: done once, not per gallery tile
        qsq_sc[...] = jnp.sum(q * q, axis=-1, keepdims=True)
        qbf_sc[...] = q.astype(jnp.bfloat16)
        max_sc[...] = jnp.full(max_sc.shape, -jnp.inf, max_sc.dtype)
        idx_sc[...] = jnp.zeros(idx_sc.shape, idx_sc.dtype)

    # F.normalize(gallery, dim=1, p=2): v / max(||v||, 1e-12)
    g = g_ref[...]                                        # (n_tile, D) f32 raw embeddings
    g_sq = jnp.sum(g * g, axis=-1, keepdims=True)
    g_n = g * lax.rsqrt(jnp.maximum(g_sq, 1e-24))
    # TODO(synk): an exactly-zero gallery row normalizes to 0 (||g_n||^2 = 0); the
    # finalize below assumes ||g_n||^2 == 1 (true for real embeddings), matching
    # the torch formula for all non-degenerate rows.

    # bf16 operands on the MXU with f32 accumulation (~3x fewer MXU passes than f32xf32)
    sim = lax.dot_general(qbf_sc[...], g_n.astype(jnp.bfloat16),
                          dimension_numbers=(((1,), (1,)), ((), ())),
                          preferred_element_type=jnp.float32)         # (M, n_tile)

    # mask padded gallery columns so they never win
    col = lax.broadcasted_iota(jnp.int32, (1, n_tile), 1) + j * n_tile
    sim = jnp.where(col < n_valid, sim, -jnp.inf)

    # running max-similarity / first-occurrence arg (== argmin of the distance)
    tile_max = jnp.max(sim, axis=-1, keepdims=True)                    # (M, 1)
    tile_idx = jnp.min(jnp.where(sim >= tile_max, col, _INT32_MAX),
                       axis=-1, keepdims=True)                         # (M, 1)
    better = tile_max > max_sc[...]              # strict >: earlier tile wins ties
    idx_sc[...] = jnp.where(better, tile_idx, idx_sc[...])
    max_sc[...] = jnp.where(better, tile_max, max_sc[...])

    @pl.when(j == pl.num_programs(0) - 1)
    def _():
        # dist = ||q||^2 + ||g_n||^2 - 2 q.g_n, finalized once instead of per tile
        min_ref[...] = qsq_sc[...] + 1.0 - 2.0 * max_sc[...]
        idx_ref[...] = idx_sc[...]


def face_match(query_feats, gallery_feats, *, n_tile=None,
               vmem_budget_bytes=16 * 1024 * 1024):
    """query_feats (M, D) f32 L2-normalized, gallery_feats (N, D) f32 raw.

    Returns (min_dist (M,), argmin_idx (M,)).  The (M, N) distance matrix is
    never written to HBM.  The gallery tile is sized as large as a ~16 MiB
    double-buffered budget allows (v7x-safe: 64 MiB physical / 32 MiB default
    scoped VMEM; v5e/v6e have 2x the headroom), so grid-step / DMA overhead is
    amortized over few, wide tiles.
    """
    M, D = query_feats.shape
    N = gallery_feats.shape[0]
    if N == 0:                                   # guard: empty gallery
        return (jnp.full((M,), jnp.inf, jnp.float32),
                jnp.zeros((M,), jnp.int32))

    if n_tile is None:
        n_tile = max(8, vmem_budget_bytes // (2 * D * 4))   # 2 = double buffering
    n_tile = _round_up(min(n_tile, _round_up(N, 8)), 8)
    n_pad = _round_up(N, n_tile)
    if n_pad != N:
        gallery_feats = jnp.pad(gallery_feats, ((0, n_pad - N), (0, 0)))

    kernel = functools.partial(_face_match_kernel, n_valid=N)
    mn, idx = pl.pallas_call(
        kernel,
        out_shape=(jax.ShapeDtypeStruct((M, 1), jnp.float32),
                   jax.ShapeDtypeStruct((M, 1), jnp.int32)),
        grid=(n_pad // n_tile,),
        in_specs=[pl.BlockSpec((M, D), lambda j: (0, 0)),        # queries resident
                  pl.BlockSpec((n_tile, D), lambda j: (j, 0))],  # gallery tile
        out_specs=(pl.BlockSpec((M, 1), lambda j: (0, 0)),
                   pl.BlockSpec((M, 1), lambda j: (0, 0))),
        scratch_shapes=[pltpu.VMEM((M, 1), jnp.float32),   # ||q||^2 (hoisted)
                        pltpu.VMEM((M, D), jnp.bfloat16),  # q in bf16 (hoisted cast)
                        pltpu.VMEM((M, 1), jnp.float32),   # running max similarity
                        pltpu.VMEM((M, 1), jnp.int32)],    # running arg index
        compiler_params=pltpu.CompilerParams(
            dimension_semantics=("arbitrary",)),   # reduction axis w/ resident accumulator
        # TODO(synk): for very large M / gallery on v7x, add a leading "parallel"
        # grid axis over query tiles so both TensorCores are used.
    )(query_feats, gallery_feats)
    return mn[:, 0], idx[:, 0]


# ----------------------------------------------------------------------------
# Python-side glue reproducing Detector.forward's matching logic
# ----------------------------------------------------------------------------
def detector_forward(frame_u8, query_feats, gallery_feats, gallery_loc,
                     person_idx, face_thres=1.15, half=False):
    # TODO(synk): letterbox / YOLO backbone / non_max_suppression / scale_coords /
    # crop_resize / MobileFacenet require pretrained weights and OpenCV; their
    # outputs (gallery_feats, gallery_loc) are provided as inputs here.
    new_img = preprocess_image(frame_u8, half=half)   # new_img /= 255.0 (fed to YOLO)

    min_dist, min_idx = face_match(query_feats, gallery_feats)

    boxes, names = [], []
    n_gal = len(gallery_loc)
    min_dist = jax.device_get(min_dist)
    min_idx = jax.device_get(min_idx)
    for q in range(query_feats.shape[0]):
        idx = int(min_idx[q])
        if float(min_dist[q]) < face_thres and 0 <= idx < n_gal:
            boxes.append(gallery_loc[idx])
            names.append(person_idx[q])
    return boxes, names, new_img


# ----------------------------------------------------------------------------
# main
# ----------------------------------------------------------------------------
if __name__ == "__main__":
    key = jax.random.PRNGKey(0)
    k_q, k_noise, k_g, k_img = jax.random.split(key, 4)

    M, N, D = 4, 8, 128          # queries, detected faces, MobileFacenet embed dim
    B, C, H, W = 1, 3, 16, 128   # small stand-in for the letterboxed frame

    # "query_feats" as produced in __init__: face-net output, then L2 normalized
    q_raw = jax.random.normal(k_q, (M, D), dtype=jnp.float32)
    query_feats = q_raw / jnp.maximum(
        jnp.sqrt(jnp.sum(q_raw * q_raw, axis=1, keepdims=True)), 1e-12)

    # Gallery: noisy copies of the queries (true matches) + random distractors,
    # mimicking MobileFacenet embeddings of detected faces.
    matches = q_raw + 0.05 * jax.random.normal(k_noise, (M, D), dtype=jnp.float32)
    distractors = jax.random.normal(k_g, (N - M, D), dtype=jnp.float32)
    gallery_feats = jnp.concatenate([matches, distractors], axis=0)

    # synthetic frame (uint8 NCHW, as torch.from_numpy(...) before /255)
    frame_u8 = jax.random.randint(
        k_img, (B, C, H, W), 0, 256, dtype=jnp.int32).astype(jnp.uint8)

    gallery_loc = [[10 * i, 10 * i, 10 * i + 96, 10 * i + 112] for i in range(N)]
    person_idx = [f"person_{i}" for i in range(M)]

    # --- kernel checks against plain-JAX references ---
    pre = preprocess_image(frame_u8)
    jax.block_until_ready(pre)
    pre_ref = frame_u8.astype(jnp.float32) / 255.0
    assert jnp.allclose(pre, pre_ref, atol=1e-6, rtol=1e-5), "preprocess mismatch"

    min_dist, min_idx = face_match(query_feats, gallery_feats)
    jax.block_until_ready(min_dist)
    jax.block_until_ready(min_idx)

    g_n = gallery_feats / jnp.maximum(
        jnp.sqrt(jnp.sum(gallery_feats ** 2, axis=1, keepdims=True)), 1e-12)
    q_sq = jnp.sum(query_feats ** 2, axis=1)
    ref_dist = (q_sq[:, None] + jnp.sum(g_n ** 2, axis=1)[None, :]
                - 2.0 * query_feats @ g_n.T)
    ref_idx = jnp.argmin(ref_dist, axis=1).astype(jnp.int32)
    # bf16-operand reference (kernel uses bf16 MXU operands with f32 accumulation)
    sim_bf16 = jnp.dot(query_feats.astype(jnp.bfloat16),
                       g_n.astype(jnp.bfloat16).T,
                       preferred_element_type=jnp.float32)
    ref_min_bf16 = q_sq + 1.0 - 2.0 * jnp.max(sim_bf16, axis=1)

    assert jnp.array_equal(min_idx, ref_idx), "argmin mismatch"
    assert jnp.allclose(min_dist, ref_min_bf16, atol=5e-3, rtol=1e-3), \
        "min dist mismatch (bf16 ref)"
    assert jnp.allclose(min_dist, jnp.min(ref_dist, axis=1), atol=5e-2, rtol=5e-2), \
        "min dist mismatch (f32 ref)"

    # --- full forward glue ---
    boxes, names, new_img = detector_forward(
        frame_u8, query_feats, gallery_feats, gallery_loc, person_idx, face_thres=1.15)
    jax.block_until_ready(new_img)

    print("KERNEL_OK")
</pallas_src>

<mosaic_0001>
module attributes {stable_mosaic.version = 11 : i64} {
  func.func @_preprocess_kernel(%arg0: i32, %arg1: i32, %arg2: memref<1x16x128xi8, #tpu.memory_space<vmem>>, %arg3: memref<1x16x128xf32, #tpu.memory_space<vmem>>) attributes {dimension_semantics = [#tpu.dimension_semantics<parallel>, #tpu.dimension_semantics<parallel>], iteration_bounds = array<i64: 3, 1>, scalar_prefetch = 0 : i64, scratch_operands = 0 : i64, tpu.core_type = #tpu.core_type<tc>, window_params = [{transform_indices = @transform_0, window_bounds = array<i64: 1, 16, 128>}, {transform_indices = @transform_1, window_bounds = array<i64: 1, 16, 128>}]} {
    %c0 = arith.constant 0 : index
    %c0_0 = arith.constant 0 : index
    %c0_1 = arith.constant 0 : index
    %0 = vector.load %arg2[%c0, %c0_0, %c0_1] : memref<1x16x128xi8, #tpu.memory_space<vmem>>, vector<1x16x128xi8>
    %1 = arith.uitofp %0 : vector<1x16x128xi8> to vector<1x16x128xf32>
    %cst = arith.constant 2.550000e+02 : f32
    %2 = vector.broadcast %cst : f32 to vector<1x16x128xf32>
    %3 = arith.divf %1, %2 : vector<1x16x128xf32>
    %c0_2 = arith.constant 0 : index
    %c0_3 = arith.constant 0 : index
    %c0_4 = arith.constant 0 : index
    %4 = vector.load %arg3[%c0_2, %c0_3, %c0_4] : memref<1x16x128xf32, #tpu.memory_space<vmem>>, vector<1x16x128xf32>
    tpu.vector_store %arg3[%c0_2, %c0_3, %c0_4], %3 {strides = array<i32>} : memref<1x16x128xf32, #tpu.memory_space<vmem>>, vector<1x16x128xf32>,
    return
  }
  func.func @transform_0(%arg0: i32, %arg1: i32) -> (i32, i32, i32) {
    %c0_i32 = arith.constant 0 : i32
    %c0_i32_0 = arith.constant 0 : i32
    return %arg0, %arg1, %c0_i32 : i32, i32, i32
  }
  func.func @transform_1(%arg0: i32, %arg1: i32) -> (i32, i32, i32) {
    %c0_i32 = arith.constant 0 : i32
    %c0_i32_0 = arith.constant 0 : i32
    return %arg0, %arg1, %c0_i32 : i32, i32, i32
  }
}

</mosaic_0001>

<llo_original>
// kernel: tpu_custom_call.1
$region0: #{tpu_custom_call.1}
  #allocation0 [shape = 'u32[]', space=smem, size = 0x4, offset = 0x4, fixed_abs, tag = 'smem constant byte address 0x4 - core index']
  #allocation1 [shape = 'u32[144,128]{1,0:T(1,128)}', space=vmem, size = 0x12000, scoped, tag = 'internal scratch']
  %s0 = inlined_call_operand.hbm [shape: u8[3,16,128], index: 0, kind: input, shape index: {}]
  %s1 = inlined_call_operand.hbm [shape: f32[3,16,128], index: 1, kind: output, shape index: {}]
  %s2 = sld [smem:[#allocation0]]
  $region41: #{tpu_custom_call.1} parent=0
    _
  %s4 = ssub.s32 1, %s2
  %s5 = scalar_select 0, %s4, %s2
  $region1: #{tpu_custom_call.1} parent=0
    #allocation2 [shape = 'u8[4096]{0}', space=vmem, size = 0x1000, scoped, tag = 'input window, operand 0']
    #allocation3 [shape = 's32[2]{0}', space=sflag, size = 0x8, scoped, tag = 'scoped memory for tpu_custom_call.1']
    #allocation4 [shape = 's32[2]{0}', space=sflag, size = 0x8, scoped, tag = 'scoped memory for tpu_custom_call.1']
    #allocation5 [shape = 'u8[16384]{0}', space=vmem, size = 0x4000, scoped, tag = 'output window, operand 0']
    %6 = vsyncpa [#allocation3], 0
    %s7 = scalar_lea.sflag [#allocation3], 1
    %8 = vsyncpa %s7, 0
    %9 = vsyncpa [#allocation4], 0
    %s10 = scalar_lea.sflag [#allocation4], 1
    %11 = vsyncpa %s10, 0
    loop: start=0, step=1, limit=5
    $region2: #{tpu_custom_call.1} parent=1 // loop_pre_header
      _
    $region3: #{tpu_custom_call.1} parent=1 // loop_header
      %s13 = sphi 0, %s17
      %p14 = scmp.ge.s32.totalorder %s13, 5
      %s20 = sphi 0, %s32
      %s21 = sphi 0, %s28
      %s22 = sphi 0, %s20
      %s23 = sphi 0, %s21
      %s24 = sphi 0, %s22
      %s25 = sphi 0, %s23
      %s37 = sphi 0, %s39
      %s40 = sphi 0, %s37
      %s41 = sphi 0, %s40
      %s57 = sphi 0, %s41
      %s65 = sphi 0, %s67
      %s68 = sphi 0, %s65
      %s69 = sphi 0, %s68
      %s85 = sphi 0, %s69
    $region4: #{tpu_custom_call.1} parent=1 // loop_header_branch
      %16 = sbr.rel (%p14) target = $region8
    $region5: #{tpu_custom_call.1} parent=1 // loop_body
      %s18 = ssub.s32 %s13, 1
      %s19 = ssub.s32 %s13, 2
      %s26 = sadd.s32 1, %s21
      %p27 = scmp.ge.s32.totalorder %s26, 1
      %s28 = scalar_select %p27, 0, %s26
      %s29 = sadd.s32 1, %s20
      %s30 = scalar_select %p27, %s29, %s20
      %p31 = scmp.ge.s32.totalorder %s30, 3
      %s32 = scalar_select %p31, 0, %s30
      %s33 = ssub.s32 %s20, %s32
      %s34 = ssub.s32 %s21, %s28
      %s35 = sor.u32 %s33, %s34
      %p36 = scmp.eq.s32.totalorder %s35, 0
      %s38 = sadd.s32 %s37, 1
      %s39 = scalar_select %p36, %s37, %s38
      %p42 = pneg %p36
      %p43 = scmp.eq.s32.totalorder %s13, 2
      %p44 = por %p42, %p43
      %p45 = scmp.ne.s32.totalorder %s37, %s40
      %p46 = scmp.eq.s32.totalorder %s13, 0
      %p47 = por %p45, %p46
      %p48 = scmp.ne.s32.totalorder %s37, %s40
      %p49 = scmp.eq.s32.totalorder %s18, 2
      %p50 = por %p48, %p49
      %p51 = scmp.ne.s32.totalorder %s40, %s41
      %p52 = scmp.eq.s32.totalorder %s18, 0
      %p53 = por %p51, %p52
      %p54 = scmp.ne.s32.totalorder %s40, %s41
      %p55 = scmp.eq.s32.totalorder %s19, 2
      %p56 = por %p54, %p55
      %p58 = scmp.ne.s32.totalorder %s41, %s57
      %p59 = scmp.eq.s32.totalorder %s19, 0
      %p60 = por %p58, %p59
      %s61 = ssub.s32 %s20, %s32
      %s62 = ssub.s32 %s21, %s28
      %s63 = sor.u32 %s61, %s62
      %p64 = scmp.eq.s32.totalorder %s63, 0
      %s66 = sadd.s32 %s65, 1
      %s67 = scalar_select %p64, %s65, %s66
      %p70 = pneg %p64
      %p71 = scmp.eq.s32.totalorder %s13, 2
      %p72 = por %p70, %p71
      %p73 = scmp.ne.s32.totalorder %s65, %s68
      %p74 = scmp.eq.s32.totalorder %s13, 0
      %p75 = por %p73, %p74
      %p76 = scmp.ne.s32.totalorder %s65, %s68
      %p77 = scmp.eq.s32.totalorder %s18, 2
      %p78 = por %p76, %p77
      %p79 = scmp.ne.s32.totalorder %s68, %s69
      %p80 = scmp.eq.s32.totalorder %s18, 0
      %p81 = por %p79, %p80
      %p82 = scmp.ne.s32.totalorder %s68, %s69
      %p83 = scmp.eq.s32.totalorder %s19, 2
      %p84 = por %p82, %p83
      %p86 = scmp.ne.s32.totalorder %s69, %s85
      %p87 = scmp.eq.s32.totalorder %s19, 0
      %p88 = por %p86, %p87
      %p89 = scmp.le.s32.totalorder 1, %s13
      %p90 = scmp.lt.s32.totalorder %s13, 4
      %p91 = pnand %p89, %p90
      %p92 = pneg %p91
      // Predicated region
      $region9: #{tpu_custom_call.1} parent=5 // pred_check
        _
      $region10: #{tpu_custom_call.1} parent=5 // pred_check_branch
        %94 = sbr.rel (%p91) target = $region12
      $region11: #{tpu_custom_call.1} parent=5 // pred_region
        %s95 = ssub.s32 %s13, 1
      $region12: #{tpu_custom_call.1} parent=5 // pred_fallthru
        _
      %p96 = scmp.lt.s32.totalorder %s13, 3
      // Predicated region
      $region13: #{tpu_custom_call.1} parent=5 // pred_check
        %p97 = pneg %p96
      $region14: #{tpu_custom_call.1} parent=5 // pred_check_branch
        %99 = sbr.rel (%p97) target = $region16
      $region15: #{tpu_custom_call.1} parent=5 // pred_region
        // Predicated region
        $region17: #{tpu_custom_call.1} parent=15 // pred_check
          %p100 = pneg %p47
        $region18: #{tpu_custom_call.1} parent=15 // pred_check_branch
          %102 = sbr.rel (%p100) target = $region20
        $region19: #{tpu_custom_call.1} parent=15 // pred_region
          %s103 = sand.u32 %s37, 1
          %s104 = scalar_lea.sflag [#allocation3], %s103
          %s105 = sand.u32 %s37, 1
          %s106 = smul.addr %s105, 4
          %s107 = scalar_lea.vmem [#allocation2], %s106
          %s108 = smul.u32 2, %s21
          %s110 = ssub.s32 64, 64
          %111 = vsyncadd %s104, %s110
          %s112 = smul.addr %s20, 2
          %s113 = sadd.s32 %s108, %s112
          %s114 = smul.addr %s113, 32
          %s115 = scalar_lea.hbm %s0, %s114
          %s116 = sshll.u32 %s107, 4
          %s117 = int_to_ptr.vmem [resolvable:$true] %s116
          %122 = dma.hbm_to_vmem [thread:$0]  %s115, 64, %s117, %s104, 32, 32, 2
        $region20: #{tpu_custom_call.1} parent=15 // pred_fallthru
          _
      $region16: #{tpu_custom_call.1} parent=5 // pred_fallthru
        _
      %p123 = scmp.le.s32.totalorder 1, %s13
      %p124 = scmp.lt.s32.totalorder %s13, 4
      %p125 = pnand %p123, %p124
      %p126 = pneg %p125
      // Predicated region
      $region21: #{tpu_custom_call.1} parent=5 // pred_check
        _
      $region22: #{tpu_custom_call.1} parent=5 // pred_check_branch
        %128 = sbr.rel (%p125) target = $region24
      $region23: #{tpu_custom_call.1} parent=5 // pred_region
        %s129 = ssub.s32 %s13, 1
        %s130 = sand.u32 %s40, 1
        %s131 = scalar_lea.sflag [#allocation3], %s130
        %s132 = sand.u32 %s40, 1
        %s133 = smul.addr %s132, 4
        %s134 = scalar_lea.vmem [#allocation2], %s133
        // Predicated region
        $region25: #{tpu_custom_call.1} parent=23 // pred_check
          %p135 = pneg %p53
        $region26: #{tpu_custom_call.1} parent=23 // pred_check_branch
          %137 = sbr.rel (%p135) target = $region28
        $region27: #{tpu_custom_call.1} parent=23 // pred_region
          %138 = dma.done %s131, 64
        $region28: #{tpu_custom_call.1} parent=23 // pred_fallthru
          _
        %s139 = sand.u32 %s40, 1
        %s140 = scalar_lea.sflag [#allocation3], %s139
        %s141 = sand.u32 %s40, 1
        %s142 = smul.addr %s141, 4
        %s143 = scalar_lea.vmem [#allocation2], %s142
        %p144 = pneg %p53
        %p145 = pneg %p50
        %p146 = pneg %p81
        %p147 = pneg %p78
        %s148 = sand.u32 %s68, 1
        %s149 = scalar_lea.sflag [#allocation4], %s148
        %s150 = sand.u32 %s68, 1
        %s151 = smul.addr %s150, 16
        %s152 = scalar_lea.vmem [#allocation5], %s151
        %s153 = smul.u32 2, %s23
        %s154 = smul.u32 2, %s23
        %v155 = vld [vmem:[%s134] sm:$0x3]
        %v156 = vld [vmem:[%s134 + $0x2] sm:$0x3]
        %v157 = vunpack.c.0.s8 %v155
        %v158 = vunpack.c.0.s8 %v156
        %v159 = vand.u32 %v157, 255
        %v160 = vand.u32 %v158, 255
        %v161 = vcvt.s32.f32 %v159
        %v162 = vcvt.s32.f32 %v160
        %v163 = vrcp.pop 255.0
        %v164 = vmul.f32 %v161, %v163
        %v165 = vmul.f32 %v162, %v163
        %166 = vst [vmem:[%s152] sm:$0xff] %v164
        %167 = vst [vmem:[%s152 + $0x8] sm:$0xff] %v165
        %s168 = sand.u32 %s68, 1
        %s169 = scalar_lea.sflag [#allocation4], %s168
        %s170 = sand.u32 %s68, 1
        %s171 = smul.addr %s170, 16
        %s172 = scalar_lea.vmem [#allocation5], %s171
        // Predicated region
        $region29: #{tpu_custom_call.1} parent=23 // pred_check
          %p173 = pneg %p78
        $region30: #{tpu_custom_call.1} parent=23 // pred_check_branch
          %175 = sbr.rel (%p173) target = $region32
        $region31: #{tpu_custom_call.1} parent=23 // pred_region
          %s176 = smul.u32 2, %s23
          %s178 = ssub.s32 256, 256
          %179 = vsyncadd %s169, %s178
          %s180 = smul.addr %s22, 2
          %s181 = sadd.s32 %s176, %s180
          %s182 = smul.addr %s181, 128
          %s183 = scalar_lea.hbm %s1, %s182
          %s184 = sshll.u32 %s172, 4
          %s185 = int_to_ptr.vmem [resolvable:$true] %s184
          %190 = dma.vmem_to_hbm [thread:$0]  %s185, 256, %s183, %s169, 128, 128, 8
        $region32: #{tpu_custom_call.1} parent=23 // pred_fallthru
          _
      $region24: #{tpu_custom_call.1} parent=5 // pred_fallthru
        _
      %p191 = scmp.le.s32.totalorder 2, %s13
      // Predicated region
      $region33: #{tpu_custom_call.1} parent=5 // pred_check
        %p192 = pneg %p191
      $region34: #{tpu_custom_call.1} parent=5 // pred_check_branch
        %194 = sbr.rel (%p192) target = $region36
      $region35: #{tpu_custom_call.1} parent=5 // pred_region
        %s195 = ssub.s32 %s13, 2
        // Predicated region
        $region37: #{tpu_custom_call.1} parent=35 // pred_check
          %p196 = pneg %p84
        $region38: #{tpu_custom_call.1} parent=35 // pred_check_branch
          %198 = sbr.rel (%p196) target = $region40
        $region39: #{tpu_custom_call.1} parent=35 // pred_region
          %s199 = sand.u32 %s69, 1
          %s200 = scalar_lea.sflag [#allocation4], %s199
          %s201 = sand.u32 %s69, 1
          %s202 = smul.addr %s201, 16
          %s203 = scalar_lea.vmem [#allocation5], %s202
          %204 = dma.done %s200, 256
        $region40: #{tpu_custom_call.1} parent=35 // pred_fallthru
          _
      $region36: #{tpu_custom_call.1} parent=5 // pred_fallthru
        _
    $region6: #{tpu_custom_call.1} parent=1 // loop_footer
      %s17 = sadd.s32 1, %s13
    $region7: #{tpu_custom_call.1} parent=1 // loop_footer_branch
      %12 = sbr.rel target = $region3
    $region8: #{tpu_custom_call.1} parent=1 // loop_exit
      _
    %205 = vsyncpa [#allocation3], 1
    %s206 = scalar_lea.sflag [#allocation3], 1
    %207 = vsyncpa %s206, 1
    %208 = vsyncpa [#allocation4], 1
    %s209 = scalar_lea.sflag [#allocation4], 1
    %210 = vsyncpa %s209, 1

</llo_original>
